<compile_context>
chip_gen: v7x
topology: tpu7x:2x2x1
jax: 0.10.0
libtpu: 0.0.40
codegen_flags: <defaults>
</compile_context>

<pallas_src>
import numpy as np
import jax
import jax.numpy as jnp
from jax import lax
from jax.experimental import pallas as pl
from jax.experimental.pallas import tpu as pltpu

NEG_SLOPE = 0.2        # CalibAttentionLayer negative_slope default
MASK_NEG = -1e30


def _recip(x):
    """EUP approximate reciprocal + one Newton step (full f32 accuracy, no VALU divide)."""
    r = pl.reciprocal(x, approx=True)
    return r * (2.0 - x * r)


# --------------------------------------------------------------------------------------
# Kernel A: per-node features (normalization, temp_lin, confidence, a_cluster scaling).
# Layout: classes/heads on sublanes, nodes on lanes.  Wide node (lane) tiles.
# --------------------------------------------------------------------------------------
def gats_node_kernel(x_ref, xs_ref, w_ref, ac_ref, acinv_ref,
                     alpha_ref, temps_ref, conf_ref):
    x = x_ref[...]            # [C, TA] raw logits (this node block)
    xs = xs_ref[...]          # [C, TA] logits sorted ascending along the class dim
    ac = ac_ref[...]          # [1, TA] a_cluster
    ac_inv = acinv_ref[...]   # [1, TA] 1 / a_cluster (precomputed in the wrapper)

    # per-node min/max normalization (monotone => commutes with the sort done outside)
    x_min = jnp.min(x, axis=0, keepdims=True)
    x_max = jnp.max(x, axis=0, keepdims=True)
    rng = x_max - x_min
    inv_rng = _recip(jnp.where(rng > 0.0, rng, 1.0))   # guard constant-logit rows
    xs_norm = (xs - x_min) * inv_rng                   # [C, TA]

    # temp^T[h, n] = sum_c W[h, c] * xs_norm[c, n]  (bf16 at the MXU boundary, f32 acc)
    tempT = lax.dot_general(w_ref[...].astype(jnp.bfloat16),
                            xs_norm.astype(jnp.bfloat16),
                            (((1,), (0,)), ((), ())),
                            preferred_element_type=jnp.float32)        # [H, TA]

    # conf = max(softmax(x)) == 1 / sum(exp(x - x_max))  -> EUP reciprocal
    conf = _recip(jnp.sum(jnp.exp(x - x_max), axis=0, keepdims=True))  # [1, TA]

    alpha_ref[...] = (x * ac_inv).astype(alpha_ref.dtype)   # [C, TA] bf16
    temps_ref[...] = (tempT * ac).astype(temps_ref.dtype)   # [H, TA] bf16
    conf_ref[...] = conf                                    # [1, TA] f32


# --------------------------------------------------------------------------------------
# Kernel B: edge-masked attention, message aggregation, temperature, logit scaling.
# Grid over target-node (lane) blocks; source-side tensors stay resident in [*, N] layout.
# --------------------------------------------------------------------------------------
def gats_attn_kernel(scal_ref,                                      # SMEM [conf_coef, bias]
                     x_ref, adjT_ref, confi_ref, indeg_ref, dinv_ref, alphab_ref,
                     alpha_ref, temps_ref, confall_ref,             # resident inputs
                     o_ref):
    conf_coef = scal_ref[0]
    bias = scal_ref[1]

    a_f = adjT_ref[...].astype(jnp.float32)   # [Np, TN] 0/1 (int8 stream, cast once)
    mask = a_f != 0.0                         # adjT[j, i] = 1 iff edge j -> i

    # attention logits St[j, i] = <alpha_j, alpha_i>  (bf16 in, f32 MXU accumulate;
    # both operands lane-dense [C, *], contraction over the class sublanes)
    St = lax.dot_general(alpha_ref[...], alphab_ref[...],
                         (((0,), (0,)), ((), ())),
                         preferred_element_type=jnp.float32)            # [Np, TN]
    St = jnp.maximum(St, NEG_SLOPE * St)                                 # leaky_relu (slope<1)

    # edge-masked softmax over sources j (sublanes), per target column i.
    # Self-loops guarantee col_max >= 0 for real nodes, so exp of masked entries
    # underflows to exactly 0 -- no second mask select needed.
    S_m = jnp.where(mask, St, MASK_NEG)
    col_max = jnp.max(S_m, axis=0, keepdims=True)                        # [1, TN]
    P = jnp.exp(S_m - col_max)                                            # [Np, TN]
    col_sum = jnp.sum(P, axis=0, keepdims=True)                           # [1, TN]

    # un-normalized aggregation on the MXU; normalize the [H, TN] result afterwards.
    simT = lax.dot_general(temps_ref[...], P.astype(jnp.bfloat16),
                           (((1,), (0,)), ((), ())),
                           preferred_element_type=jnp.float32)            # [H, TN]
    simT = simT * _recip(jnp.where(col_sum > 0.0, col_sum, 1.0))

    # dconf_i = in_deg_i * conf_i - sum_j A[j,i] * conf_j   (MXU matvec, idle MXU slot)
    conf_src = lax.dot_general(confall_ref[...], a_f,
                               (((1,), (0,)), ((), ())),
                               preferred_element_type=jnp.float32)        # [1, TN]
    dconf = confi_ref[...] * indeg_ref[...] - conf_src                    # [1, TN]

    # softplus(sim + conf_coef * dconf / out_deg), mean over heads, + bias
    z = simT + dconf * (conf_coef * dinv_ref[...])                        # [H, TN]
    softplus = jnp.maximum(z, 0.0) + jnp.log(1.0 + jnp.exp(-jnp.abs(z)))
    temperature = jnp.mean(softplus, axis=0, keepdims=True) + bias        # [1, TN]

    # GATS.forward: logits / temperature  (full-lane-width store over TN nodes)
    o_ref[...] = x_ref[...] * _recip(temperature)                         # [C, TN]


# --------------------------------------------------------------------------------------
# Wrapper
# --------------------------------------------------------------------------------------
def _pick_tile(n, candidates):
    for t in candidates:
        if n % t == 0:
            return t
    return 128


def gats_forward(features, params, graph):
    """GATS.forward: logits = model(features); return logits / graph_temperature_scale(logits)."""
    # TODO(synk): the wrapped backbone "model(g, features)" is an external module in the
    # original code -> simple linear stand-in here (glue, not part of the calibrator).
    logits = (features @ params["w_model"]).astype(jnp.float32)          # [N, C]
    N, C = logits.shape
    H = params["w_temp"].shape[0]

    n_pad = ((N + 127) // 128) * 128          # pad node axis to a lane multiple
    pad = n_pad - N

    # TODO(synk): no Pallas sort primitive; min/max normalization is monotone so sorting
    # the raw logits here (XLA) and normalizing inside kernel A is equivalent.
    x_sorted = jnp.sort(logits, axis=-1)

    # a_cluster from dist_to_train and the learnable scalars (parameter gather -> glue).
    a_cluster = jnp.where(graph["dist_to_train"] == 0, params["train_a"],
                          jnp.where(graph["dist_to_train"] == 1, params["dist1_a"], 1.0)
                          ).astype(jnp.float32)                          # [N]

    # Lane-dense layouts (features on sublanes, nodes on lanes) + node padding.
    def pad_cols(m):
        return jnp.pad(m, ((0, 0), (0, pad))) if pad else m

    xT = pad_cols(logits.T)                                              # [C, Np]
    xsT = pad_cols(x_sorted.T)                                           # [C, Np]
    ac_full = jnp.concatenate([a_cluster, jnp.ones((pad,), jnp.float32)]) if pad else a_cluster
    ac_row = ac_full.reshape(1, n_pad)
    ac_inv_row = (1.0 / ac_full).reshape(1, n_pad)

    adjT = graph["adjT"]                                                 # int8 0/1, [N, N]
    if pad:
        adjT = jnp.pad(adjT, ((0, pad), (0, pad)))
    deg_inv_row = pad_cols(graph["deg_inv_row"])                         # [1, Np]
    in_deg_row = pad_cols(graph["in_deg_row"])                           # [1, Np]

    parallel = pltpu.CompilerParams(dimension_semantics=("parallel",))

    # ---- Kernel A: per-node features (wide, decoupled node tile) ----
    tn_a = _pick_tile(n_pad, (4096, 2048, 1024, 512, 256, 128))
    alphaT, temp_sT, conf_row = pl.pallas_call(
        gats_node_kernel,
        out_shape=(jax.ShapeDtypeStruct((C, n_pad), jnp.bfloat16),
                   jax.ShapeDtypeStruct((H, n_pad), jnp.bfloat16),
                   jax.ShapeDtypeStruct((1, n_pad), jnp.float32)),
        grid=(n_pad // tn_a,),
        in_specs=[pl.BlockSpec((C, tn_a), lambda i: (0, i)),
                  pl.BlockSpec((C, tn_a), lambda i: (0, i)),
                  pl.BlockSpec((H, C), lambda i: (0, 0)),     # temp_lin weight, resident
                  pl.BlockSpec((1, tn_a), lambda i: (0, i)),
                  pl.BlockSpec((1, tn_a), lambda i: (0, i))],
        out_specs=(pl.BlockSpec((C, tn_a), lambda i: (0, i)),
                   pl.BlockSpec((H, tn_a), lambda i: (0, i)),
                   pl.BlockSpec((1, tn_a), lambda i: (0, i))),
        compiler_params=parallel,
    )(xT, xsT, params["w_temp"], ac_row, ac_inv_row)

    # ---- Kernel B: attention + temperature + scaling ----
    # 256-wide target tile when it still leaves >=2 grid steps (v6e MXU fill, v7x megacore).
    tn_b = 256 if (n_pad % 256 == 0 and n_pad // 256 >= 2) else 128
    scalars = jnp.array([params["conf_coef"], params["bias"]], dtype=jnp.float32)

    # Rough VMEM working-set estimate -> explicit limit (capped at v7x's 64 MiB physical).
    resid_bytes = 2 * C * n_pad + 2 * H * n_pad + 4 * n_pad
    tile_bytes = n_pad * tn_b + (4 + 2 + 4) * C * tn_b + 3 * 4 * tn_b
    tmp_bytes = 3 * 4 * n_pad * tn_b
    est = 2 * (resid_bytes + tile_bytes) + tmp_bytes
    vmem_limit = int(min(64 * 1024 * 1024, max(32 * 1024 * 1024, 2 * est)))
    cp_b = pltpu.CompilerParams(dimension_semantics=("parallel",),
                                vmem_limit_bytes=vmem_limit)
    # TODO(synk): residents below (constant index_map) could use pipeline_mode=pl.Buffered(1)
    # to save one buffer each under v7x's 64 MiB VMEM; left at the default for portability.

    outT = pl.pallas_call(
        gats_attn_kernel,
        out_shape=jax.ShapeDtypeStruct((C, n_pad), jnp.float32),
        grid=(n_pad // tn_b,),
        in_specs=[pl.BlockSpec(memory_space=pltpu.MemorySpace.SMEM),   # [conf_coef, bias]
                  pl.BlockSpec((C, tn_b), lambda i: (0, i)),           # logits block
                  pl.BlockSpec((n_pad, tn_b), lambda i: (0, i)),       # adjacency^T block (int8)
                  pl.BlockSpec((1, tn_b), lambda i: (0, i)),           # conf (target block)
                  pl.BlockSpec((1, tn_b), lambda i: (0, i)),           # in-degree block
                  pl.BlockSpec((1, tn_b), lambda i: (0, i)),           # 1/out-degree block
                  pl.BlockSpec((C, tn_b), lambda i: (0, i)),           # alpha (target block, tiled)
                  pl.BlockSpec((C, n_pad), lambda i: (0, 0)),          # alpha, all nodes (resident)
                  pl.BlockSpec((H, n_pad), lambda i: (0, 0)),          # temp_s, all nodes (resident)
                  pl.BlockSpec((1, n_pad), lambda i: (0, 0))],         # conf, all nodes (resident)
        out_specs=pl.BlockSpec((C, tn_b), lambda i: (0, i)),
        compiler_params=cp_b,
    )(scalars, xT, adjT, conf_row, in_deg_row, deg_inv_row,
      alphaT, alphaT, temp_sT, conf_row)

    calibrated = outT[:, :N].T                                           # [N, C]
    return calibrated, logits


# --------------------------------------------------------------------------------------
# Pure-JAX reference of the same dense formulation (mirrors the bf16 MXU boundaries).
# --------------------------------------------------------------------------------------
def reference_forward(features, params, graph):
    x = (features @ params["w_model"]).astype(jnp.float32)
    N, C = x.shape
    xs = jnp.sort(x, axis=-1)
    x_min = jnp.min(x, axis=1, keepdims=True)
    x_max = jnp.max(x, axis=1, keepdims=True)
    rng = x_max - x_min
    xs_norm = (xs - x_min) / jnp.where(rng > 0.0, rng, 1.0)
    temp = jnp.dot(xs_norm.astype(jnp.bfloat16), params["w_temp"].T.astype(jnp.bfloat16),
                   preferred_element_type=jnp.float32)                   # [N, H]
    conf = 1.0 / jnp.sum(jnp.exp(x - x_max), axis=1, keepdims=True)      # = max(softmax(x))
    ac = jnp.where(graph["dist_to_train"] == 0, params["train_a"],
                   jnp.where(graph["dist_to_train"] == 1, params["dist1_a"], 1.0)
                   ).astype(jnp.float32).reshape(N, 1)
    alpha = (x * (1.0 / ac)).astype(jnp.bfloat16)                        # bf16 at MXU boundary
    temp_s = (temp * ac).astype(jnp.bfloat16)
    A = graph["adjT"].T.astype(jnp.float32)                              # A[i, j] = 1 iff edge j->i
    mask = A != 0.0
    S = jnp.dot(alpha, alpha.T, preferred_element_type=jnp.float32)
    S = jnp.where(S >= 0.0, S, NEG_SLOPE * S)
    S_m = jnp.where(mask, S, MASK_NEG)
    P = jnp.exp(S_m - jnp.max(S_m, axis=1, keepdims=True))
    col_sum = jnp.sum(P, axis=1, keepdims=True)
    sim = jnp.dot(P.astype(jnp.bfloat16), temp_s,
                  preferred_element_type=jnp.float32) / col_sum
    in_deg = jnp.sum(A, axis=1, keepdims=True)
    dconf = in_deg * conf - jnp.dot(A, conf)
    z = sim + params["conf_coef"] * dconf * graph["deg_inv_row"].reshape(N, 1)
    softplus = jnp.maximum(z, 0.0) + jnp.log(1.0 + jnp.exp(-jnp.abs(z)))
    temperature = jnp.mean(softplus, axis=1, keepdims=True) + params["bias"]
    return x / temperature


if __name__ == "__main__":
    N, C, H, F_IN = 256, 8, 8, 32  # nodes, num_class (in_channels), heads, backbone feature dim

    key = jax.random.PRNGKey(0)
    k1, k2, k3 = jax.random.split(key, 3)
    features = jax.random.normal(k1, (N, F_IN), dtype=jnp.float32)
    w_model = jax.random.normal(k2, (F_IN, C), dtype=jnp.float32) * 0.3

    # temp_lin: Linear(in=C, out=H, bias=False), glorot init; weight stored [H, C] like torch.
    limit = float(np.sqrt(6.0 / (C + H)))
    w_temp = jax.random.uniform(k3, (H, C), minval=-limit, maxval=limit, dtype=jnp.float32)

    # Synthetic directed graph: bidirectional ring + self loops (self_loops=True in __init__).
    src, dst = [], []
    for i in range(N):
        src += [i, i, i]
        dst += [(i + 1) % N, (i - 1) % N, i]
    src = np.array(src)
    dst = np.array(dst)
    adjT = np.zeros((N, N), dtype=np.int8)         # adjT[src, dst] = 1 iff edge src -> dst
    adjT[src, dst] = 1
    out_deg = np.bincount(src, minlength=N).astype(np.float32)   # degree(edge_index[0])
    in_deg = np.bincount(dst, minlength=N).astype(np.float32)    # in-degree (dconf aggregation)
    deg_inv_row = np.where(out_deg > 0, 1.0 / out_deg, 0.0).reshape(1, N).astype(np.float32)
    in_deg_row = in_deg.reshape(1, N)

    # Synthetic dist_to_train buffer (would come from shortest_path_length in the original).
    dist_to_train = np.tile(np.array([0, 1, 2, 3], dtype=np.int32), N // 4)

    params = dict(
        w_model=w_model,
        w_temp=w_temp,
        conf_coef=jnp.float32(0.5),
        bias=jnp.float32(1.0),
        train_a=jnp.float32(1.25),
        dist1_a=jnp.float32(0.8),
    )
    graph = dict(
        adjT=jnp.asarray(adjT),                     # int8 0/1 adjacency (mask-only stream)
        deg_inv_row=jnp.asarray(deg_inv_row),
        in_deg_row=jnp.asarray(in_deg_row),
        dist_to_train=jnp.asarray(dist_to_train),
    )

    calibrated, logits = gats_forward(features, params, graph)
    calibrated = jax.block_until_ready(calibrated)

    ref = jax.block_until_ready(reference_forward(features, params, graph))
    # Tolerance accounts for bf16 inputs at the MXU boundaries (mirrored in the reference).
    np.testing.assert_allclose(np.asarray(calibrated), np.asarray(ref), rtol=3e-3, atol=3e-3)
    print("KERNEL_OK")
</pallas_src>

<mosaic_0001>
module attributes {stable_mosaic.version = 11 : i64} {
  func.func @gats_node_kernel(%arg0: i32, %arg1: memref<8x256xf32, #tpu.memory_space<vmem>>, %arg2: memref<8x256xf32, #tpu.memory_space<vmem>>, %arg3: memref<8x8xf32, #tpu.memory_space<vmem>>, %arg4: memref<1x256xf32, #tpu.memory_space<vmem>>, %arg5: memref<1x256xf32, #tpu.memory_space<vmem>>, %arg6: memref<8x256xbf16, #tpu.memory_space<vmem>>, %arg7: memref<8x256xbf16, #tpu.memory_space<vmem>>, %arg8: memref<1x256xf32, #tpu.memory_space<vmem>>) attributes {dimension_semantics = [#tpu.dimension_semantics<parallel>], iteration_bounds = array<i64: 1>, scalar_prefetch = 0 : i64, scratch_operands = 0 : i64, tpu.core_type = #tpu.core_type<tc>, window_params = [{transform_indices = @transform_0, window_bounds = array<i64: 8, 256>}, {transform_indices = @transform_1, window_bounds = array<i64: 8, 256>}, {pipeline_mode = #tpu.pipeline_mode<synchronous>, transform_indices = @transform_2, window_bounds = array<i64: 8, 8>}, {transform_indices = @transform_3, window_bounds = array<i64: 1, 256>}, {transform_indices = @transform_4, window_bounds = array<i64: 1, 256>}, {transform_indices = @transform_5, window_bounds = array<i64: 8, 256>}, {transform_indices = @transform_6, window_bounds = array<i64: 8, 256>}, {transform_indices = @transform_7, window_bounds = array<i64: 1, 256>}]} {
    %c0 = arith.constant 0 : index
    %c0_0 = arith.constant 0 : index
    %0 = vector.load %arg1[%c0, %c0_0] : memref<8x256xf32, #tpu.memory_space<vmem>>, vector<8x256xf32>
    %c0_1 = arith.constant 0 : index
    %c0_2 = arith.constant 0 : index
    %1 = vector.load %arg2[%c0_1, %c0_2] : memref<8x256xf32, #tpu.memory_space<vmem>>, vector<8x256xf32>
    %c0_3 = arith.constant 0 : index
    %c0_4 = arith.constant 0 : index
    %2 = vector.load %arg4[%c0_3, %c0_4] : memref<1x256xf32, #tpu.memory_space<vmem>>, vector<1x256xf32>
    %c0_5 = arith.constant 0 : index
    %c0_6 = arith.constant 0 : index
    %3 = vector.load %arg5[%c0_5, %c0_6] : memref<1x256xf32, #tpu.memory_space<vmem>>, vector<1x256xf32>
    %cst = arith.constant dense<0x7F800000> : vector<256xf32>
    %4 = vector.multi_reduction <minimumf>, %0, %cst [0] : vector<8x256xf32> to vector<256xf32>
    %5 = vector.shape_cast %4 : vector<256xf32> to vector<1x256xf32>
    %cst_7 = arith.constant dense<0xFF800000> : vector<256xf32>
    %6 = vector.multi_reduction <maximumf>, %0, %cst_7 [0] : vector<8x256xf32> to vector<256xf32>
    %7 = vector.shape_cast %6 : vector<256xf32> to vector<1x256xf32>
    %8 = arith.subf %7, %5 : vector<1x256xf32>
    %cst_8 = arith.constant 0.000000e+00 : f32
    %9 = vector.broadcast %cst_8 : f32 to vector<1x256xf32>
    %10 = arith.cmpf ogt, %8, %9 : vector<1x256xf32>
    %cst_9 = arith.constant 1.000000e+00 : f32
    %11 = vector.broadcast %cst_9 : f32 to vector<1x256xf32>
    %12 = arith.select %10, %8, %11 : vector<1x256xi1>, vector<1x256xf32>
    %13 = tpu.reciprocal %12 {approx = true} : vector<1x256xf32> -> vector<1x256xf32>
    %14 = arith.mulf %12, %13 : vector<1x256xf32>
    %cst_10 = arith.constant 2.000000e+00 : f32
    %15 = vector.broadcast %cst_10 : f32 to vector<1x256xf32>
    %16 = arith.subf %15, %14 : vector<1x256xf32>
    %17 = arith.mulf %13, %16 : vector<1x256xf32>
    %18 = vector.broadcast %5 : vector<1x256xf32> to vector<8x256xf32>
    %19 = arith.subf %1, %18 : vector<8x256xf32>
    %20 = vector.broadcast %17 : vector<1x256xf32> to vector<8x256xf32>
    %21 = arith.mulf %19, %20 : vector<8x256xf32>
    %c0_11 = arith.constant 0 : index
    %c0_12 = arith.constant 0 : index
    %22 = vector.load %arg3[%c0_11, %c0_12] : memref<8x8xf32, #tpu.memory_space<vmem>>, vector<8x8xf32>
    %23 = arith.truncf %22 : vector<8x8xf32> to vector<8x8xbf16>
    %24 = arith.truncf %21 : vector<8x256xf32> to vector<8x256xbf16>
    %cst_13 = arith.constant dense<0.000000e+00> : vector<8x256xf32>
    %25 = tpu.matmul %23, %24, %cst_13 {dimension_numbers = #tpu.dot_dimension_numbers<[1], [0], [0], [1], [0, 0, 1, 1], [], []>} : vector<8x8xbf16>, vector<8x256xbf16>, vector<8x256xf32> -> vector<8x256xf32>
    %26 = vector.broadcast %7 : vector<1x256xf32> to vector<8x256xf32>
    %27 = arith.subf %0, %26 : vector<8x256xf32>
    %28 = math.exp %27 : vector<8x256xf32>
    %cst_14 = arith.constant dense<0.000000e+00> : vector<256xf32>
    %29 = vector.multi_reduction <add>, %28, %cst_14 [0] : vector<8x256xf32> to vector<256xf32>
    %30 = vector.shape_cast %29 : vector<256xf32> to vector<1x256xf32>
    %31 = tpu.reciprocal %30 {approx = true} : vector<1x256xf32> -> vector<1x256xf32>
    %32 = arith.mulf %30, %31 : vector<1x256xf32>
    %cst_15 = arith.constant 2.000000e+00 : f32
    %33 = vector.broadcast %cst_15 : f32 to vector<1x256xf32>
    %34 = arith.subf %33, %32 : vector<1x256xf32>
    %35 = arith.mulf %31, %34 : vector<1x256xf32>
    %36 = vector.broadcast %3 : vector<1x256xf32> to vector<8x256xf32>
    %37 = arith.mulf %0, %36 : vector<8x256xf32>
    %38 = arith.truncf %37 : vector<8x256xf32> to vector<8x256xbf16>
    %c0_16 = arith.constant 0 : index
    %c0_17 = arith.constant 0 : index
    %39 = vector.load %arg6[%c0_16, %c0_17] : memref<8x256xbf16, #tpu.memory_space<vmem>>, vector<8x256xbf16>
    tpu.vector_store %arg6[%c0_16, %c0_17], %38 {strides = array<i32>} : memref<8x256xbf16, #tpu.memory_space<vmem>>, vector<8x256xbf16>,
    %40 = vector.broadcast %2 : vector<1x256xf32> to vector<8x256xf32>
    %41 = arith.mulf %25, %40 : vector<8x256xf32>
    %42 = arith.truncf %41 : vector<8x256xf32> to vector<8x256xbf16>
    %c0_18 = arith.constant 0 : index
    %c0_19 = arith.constant 0 : index
    %43 = vector.load %arg7[%c0_18, %c0_19] : memref<8x256xbf16, #tpu.memory_space<vmem>>, vector<8x256xbf16>
    tpu.vector_store %arg7[%c0_18, %c0_19], %42 {strides = array<i32>} : memref<8x256xbf16, #tpu.memory_space<vmem>>, vector<8x256xbf16>,
    %c0_20 = arith.constant 0 : index
    %c0_21 = arith.constant 0 : index
    %44 = vector.load %arg8[%c0_20, %c0_21] : memref<1x256xf32, #tpu.memory_space<vmem>>, vector<1x256xf32>
    tpu.vector_store %arg8[%c0_20, %c0_21], %35 {strides = array<i32>} : memref<1x256xf32, #tpu.memory_space<vmem>>, vector<1x256xf32>,
    return
  }
  func.func @transform_0(%arg0: i32) -> (i32, i32) {
    %c0_i32 = arith.constant 0 : i32
    %c0_i32_0 = arith.constant 0 : i32
    return %c0_i32, %arg0 : i32, i32
  }
  func.func @transform_1(%arg0: i32) -> (i32, i32) {
    %c0_i32 = arith.constant 0 : i32
    %c0_i32_0 = arith.constant 0 : i32
    return %c0_i32, %arg0 : i32, i32
  }
  func.func @transform_2(%arg0: i32) -> (i32, i32) {
    %c0_i32 = arith.constant 0 : i32
    %c0_i32_0 = arith.constant 0 : i32
    %c0_i32_1 = arith.constant 0 : i32
    return %c0_i32, %c0_i32_0 : i32, i32
  }
  func.func @transform_3(%arg0: i32) -> (i32, i32) {
    %c0_i32 = arith.constant 0 : i32
    %c0_i32_0 = arith.constant 0 : i32
    return %c0_i32, %arg0 : i32, i32
  }
  func.func @transform_4(%arg0: i32) -> (i32, i32) {
    %c0_i32 = arith.constant 0 : i32
    %c0_i32_0 = arith.constant 0 : i32
    return %c0_i32, %arg0 : i32, i32
  }
  func.func @transform_5(%arg0: i32) -> (i32, i32) {
    %c0_i32 = arith.constant 0 : i32
    %c0_i32_0 = arith.constant 0 : i32
    return %c0_i32, %arg0 : i32, i32
  }
  func.func @transform_6(%arg0: i32) -> (i32, i32) {
    %c0_i32 = arith.constant 0 : i32
    %c0_i32_0 = arith.constant 0 : i32
    return %c0_i32, %arg0 : i32, i32
  }
  func.func @transform_7(%arg0: i32) -> (i32, i32) {
    %c0_i32 = arith.constant 0 : i32
    %c0_i32_0 = arith.constant 0 : i32
    return %c0_i32, %arg0 : i32, i32
  }
}

</mosaic_0001>

<llo_original>
// kernel: tpu_custom_call.1
$region0: #{tpu_custom_call.1}
  #allocation0 [shape = 'u32[]', space=smem, size = 0x4, offset = 0x4, fixed_abs, tag = 'smem constant byte address 0x4 - core index']
  #allocation1 [shape = 'u32[144,128]{1,0:T(1,128)}', space=vmem, size = 0x12000, scoped, tag = 'internal scratch']
  %s0 = inlined_call_operand.hbm [shape: f32[8,256], index: 0, kind: input, shape index: {}]
  %s1 = inlined_call_operand.hbm [shape: f32[8,256], index: 1, kind: input, shape index: {}]
  %s2 = inlined_call_operand.hbm [shape: f32[8,8], index: 2, kind: input, shape index: {}]
  %s3 = inlined_call_operand.vmem [shape: f32[1,256], index: 3, kind: input, shape index: {}]
  %s4 = inlined_call_operand.vmem [shape: f32[1,256], index: 4, kind: input, shape index: {}]
  %s5 = inlined_call_operand.hbm [shape: bf16[8,256], index: 5, kind: output, shape index: {0}]
  %s6 = inlined_call_operand.hbm [shape: bf16[8,256], index: 6, kind: output, shape index: {1}]
  %s7 = inlined_call_operand.hbm [shape: f32[1,256], index: 7, kind: output, shape index: {2}]
  %8 = xla_tuple %s5, %s6, %s7
  %s9 = sld [smem:[#allocation0]]
  $region58: #{tpu_custom_call.1} parent=0
    _
  %s11 = ssub.s32 1, %s9
  %s12 = scalar_select 0, %s11, %s9
  $region1: #{tpu_custom_call.1} parent=0
    #allocation2 [shape = 'u8[8192]{0}', space=vmem, size = 0x2000, scoped, tag = 'input window, operand 0, single buffered']
    #allocation3 [shape = 's32[1]{0}', space=sflag, size = 0x4, scoped, tag = 'scoped memory for tpu_custom_call.1']
    #allocation4 [shape = 's32[1]{0}', space=sflag, size = 0x4, scoped, tag = 'scoped memory for tpu_custom_call.1']
    #allocation5 [shape = 'u8[8192]{0}', space=vmem, size = 0x2000, scoped, tag = 'input window, operand 1, single buffered']
    #allocation6 [shape = 's32[1]{0}', space=sflag, size = 0x4, scoped, tag = 'scoped memory for tpu_custom_call.1']
    #allocation7 [shape = 'u8[4096]{0}', space=vmem, size = 0x1000, scoped, tag = 'input window, operand 2, single buffered']
    #allocation8 [shape = 'u8[4096]{0}', space=vmem, size = 0x1000, scoped, tag = 'output window, operand 0, single buffered']
    #allocation9 [shape = 'u8[4096]{0}', space=vmem, size = 0x1000, scoped, tag = 'output window, operand 1, single buffered']
    #allocation10 [shape = 's32[1]{0}', space=sflag, size = 0x4, scoped, tag = 'scoped memory for tpu_custom_call.1']
    #allocation11 [shape = 'u8[1024]{0}', space=vmem, size = 0x400, scoped, tag = 'output window, operand 2, single buffered']
    %13 = vsyncpa [#allocation3], 0
    %14 = vsyncpa [#allocation6], 0
    %15 = vsyncpa [#allocation4], 0
    %16 = vsyncpa [#allocation10], 0
    // Predicated region
    $region2: #{tpu_custom_call.1} parent=1 // pred_check
      _
    $region3: #{tpu_custom_call.1} parent=1 // pred_check_branch
      %18 = sbr.rel (0) target = $region5
    $region4: #{tpu_custom_call.1} parent=1 // pred_region
      %s20 = ssub.s32 256, 256
      %21 = vsyncadd [#allocation3], %s20
      %s23 = sshll.u32 [#allocation2], 4
      %s24 = int_to_ptr.vmem [resolvable:$true] %s23
      %26 = dma.hbm_to_vmem [thread:$0]  %s0, 256, %s24, [#allocation3]
    $region5: #{tpu_custom_call.1} parent=1 // pred_fallthru
      _
    // Predicated region
    $region6: #{tpu_custom_call.1} parent=1 // pred_check
      _
    $region7: #{tpu_custom_call.1} parent=1 // pred_check_branch
      %28 = sbr.rel (0) target = $region9
    $region8: #{tpu_custom_call.1} parent=1 // pred_region
      %s30 = ssub.s32 256, 256
      %31 = vsyncadd [#allocation6], %s30
      %s33 = sshll.u32 [#allocation5], 4
      %s34 = int_to_ptr.vmem [resolvable:$true] %s33
      %36 = dma.hbm_to_vmem [thread:$0]  %s1, 256, %s34, [#allocation6]
    $region9: #{tpu_custom_call.1} parent=1 // pred_fallthru
      _
    // Predicated region
    $region10: #{tpu_custom_call.1} parent=1 // pred_check
      _
    $region11: #{tpu_custom_call.1} parent=1 // pred_check_branch
      %38 = sbr.rel (0) target = $region13
    $region12: #{tpu_custom_call.1} parent=1 // pred_region
      %s40 = ssub.s32 128, 128
      %41 = vsyncadd [#allocation6], %s40
      %s43 = sshll.u32 [#allocation7], 4
      %s44 = int_to_ptr.vmem [resolvable:$true] %s43
      %46 = dma.hbm_to_vmem [thread:$0]  %s2, 128, %s44, [#allocation6]
    $region13: #{tpu_custom_call.1} parent=1 // pred_fallthru
      _
    // Predicated region
    $region14: #{tpu_custom_call.1} parent=1 // pred_check
      _
    $region15: #{tpu_custom_call.1} parent=1 // pred_check_branch
      %48 = sbr.rel (0) target = $region17
    $region16: #{tpu_custom_call.1} parent=1 // pred_region
      _
    $region17: #{tpu_custom_call.1} parent=1 // pred_fallthru
      _
    // Predicated region
    $region18: #{tpu_custom_call.1} parent=1 // pred_check
      _
    $region19: #{tpu_custom_call.1} parent=1 // pred_check_branch
      %50 = sbr.rel (0) target = $region21
    $region20: #{tpu_custom_call.1} parent=1 // pred_region
      _
    $region21: #{tpu_custom_call.1} parent=1 // pred_fallthru
      _
    // Predicated region
    $region22: #{tpu_custom_call.1} parent=1 // pred_check
      _
    $region23: #{tpu_custom_call.1} parent=1 // pred_check_branch
      %52 = sbr.rel (0) target = $region25
    $region24: #{tpu_custom_call.1} parent=1 // pred_region
      %53 = dma.done [#allocation3], 256
    $region25: #{tpu_custom_call.1} parent=1 // pred_fallthru
      _
    // Predicated region
    $region26: #{tpu_custom_call.1} parent=1 // pred_check
      _
    $region27: #{tpu_custom_call.1} parent=1 // pred_check_branch
      %55 = sbr.rel (0) target = $region29
    $region28: #{tpu_custom_call.1} parent=1 // pred_region
      %56 = dma.done [#allocation6], 256
    $region29: #{tpu_custom_call.1} parent=1 // pred_fallthru
      _
    // Predicated region
    $region30: #{tpu_custom_call.1} parent=1 // pred_check
      _
    $region31: #{tpu_custom_call.1} parent=1 // pred_check_branch
      %58 = sbr.rel (0) target = $region33
    $region32: #{tpu_custom_call.1} parent=1 // pred_region
      %59 = dma.done [#allocation6], 128
    $region33: #{tpu_custom_call.1} parent=1 // pred_fallthru
      _
    %v61 = vld [vmem:[#allocation2] sm:$0xff]
    %v62 = vld [vmem:[#allocation2 + $0x8] sm:$0xff]
    %v63 = vld [vmem:[#allocation5] sm:$0xff]
    %v64 = vld [vmem:[#allocation5 + $0x8] sm:$0xff]
    %v65 = vld [vmem:[%s3] sm:$0x3]
    %v66 = vld [vmem:[%s4] sm:$0x3]
    %v67 = vrot.slane %v61, 4
    %v68 = vmin.f32 %v61, %v67
    %v69 = vrot.slane %v68, 2
    %v70 = vmin.f32 %v68, %v69
    %v71 = vrot.slane %v70, 1
    %v72 = vmin.f32 %v70, %v71
    %v73 = vrot.slane %v62, 4
    %v74 = vmin.f32 %v62, %v73
    %v75 = vrot.slane %v74, 2
    %v76 = vmin.f32 %v74, %v75
    %v77 = vrot.slane %v76, 1
    %v78 = vmin.f32 %v76, %v77
    %v79 = vrot.slane %v61, 4
    %v80 = vmax.f32 %v61, %v79
    %v81 = vrot.slane %v80, 2
    %v82 = vmax.f32 %v80, %v81
    %v83 = vrot.slane %v82, 1
    %v84 = vmax.f32 %v82, %v83
    %v85 = vrot.slane %v62, 4
    %v86 = vmax.f32 %v62, %v85
    %v87 = vrot.slane %v86, 2
    %v88 = vmax.f32 %v86, %v87
    %v89 = vrot.slane %v88, 1
    %v90 = vmax.f32 %v88, %v89
    %v91 = vsub.f32 %v84, %v72
    %v92 = vsub.f32 %v90, %v78
    %vm93 = vcmp.gt.f32.partialorder %v91, 0.0
    %vm94 = vcmp.gt.f32.partialorder %v92, 0.0
    %v95 = vsel %vm93, %v91, 1.0
    %v96 = vsel %vm94, %v92, 1.0
    %v97 = vrcp.pop %v95
    %v98 = vrcp.pop %v96
    %v99 = vmul.f32 %v95, %v97
    %v100 = vmul.f32 %v96, %v98
    %v101 = vsub.f32 2.0, %v99
    %v102 = vsub.f32 2.0, %v100
    %v103 = vmul.f32 %v97, %v101
    %v104 = vmul.f32 %v98, %v102
    %v105 = vsub.f32 %v63, %v72
    %v106 = vsub.f32 %v64, %v78
    %v107 = vmul.f32 %v105, %v103
    %v108 = vmul.f32 %v106, %v104
    %v109 = vld [vmem:[#allocation7] sm:$0xff]
    %v110 = vpack.c.bf16 %v109, %v109
    %v111 = vpack.c.bf16 %v107, %v107
    %v112 = vpack.c.bf16 %v108, %v108
    %vm113 = vcmask 64512
    %v115 = vsel %vm113, %v110, 0
    %vm117 = vcmask 1043456
    %v119 = vsel %vm117, %v111, 0
    %v122 = vsel %vm117, %v112, 0
    %124 = vmatprep.subr.bf16.mxu0 %v122
    %125 = vmatpush1.bf16.msra.mxu0 %v119
    %126 = vmatprep.subr.bf16.mxu0 0
    %127 = vmatpush1.bf16.msra.mxu0 0
    %128 = vmatprep.subr.bf16.mxu0 0
    %129 = vmatpush1.bf16.msra.mxu0 0
    %130 = vmatprep.subr.bf16.mxu0 0
    %131 = vmatpush1.bf16.msra.mxu0 0
    %132 = vmatprep.subr.bf16.mxu0 0
    %133 = vmatpush1.bf16.msra.mxu0 0
    %134 = vmatprep.subr.bf16.mxu0 0
    %135 = vmatpush1.bf16.msra.mxu0 0
    %136 = vmatprep.subr.bf16.mxu0 0
    %137 = vmatpush1.bf16.msra.mxu0 0
    %138 = vmatprep.subr.bf16.mxu0 0
    %139 = vmatpush1.bf16.msra.mxu0 0
    %140 = vmatprep.subr.bf16.mxu0 0
    %141 = vmatpush1.bf16.msra.mxu0 0
    %142 = vmatprep.subr.bf16.mxu0 0
    %143 = vmatpush1.bf16.msra.mxu0 0
    %144 = vmatprep.subr.bf16.mxu0 0
    %145 = vmatpush1.bf16.msra.mxu0 0
    %146 = vmatprep.subr.bf16.mxu0 0
    %147 = vmatpush1.bf16.msra.mxu0 0
    %148 = vmatprep.subr.bf16.mxu0 0
    %149 = vmatpush1.bf16.msra.mxu0 0
    %150 = vmatprep.subr.bf16.mxu0 0
    %151 = vmatpush1.bf16.msra.mxu0 0
    %152 = vmatprep.subr.bf16.mxu0 0
    %153 = vmatpush1.bf16.msra.mxu0 0
    %154 = vmatprep.subr.bf16.mxu0 0
    %155 = vmatpush1.bf16.msra.mxu0 0
    %156 = vmatprep.mubr.bf16.mxu0 0
    %157 = vmatmul.mubr.bf16.gmra.mrb[0].mxu0 %v115
    %v158 = vpop.f32.mrb[0].mxu0
    %v159 = vadd.f32 0.0, %v158
    %v160 = vpop.f32.mrb[0].mxu0
    %v161 = vadd.f32 0.0, %v160
    %v162 = vpop.f32.mrb[0].mxu0
    %v163 = vpop.f32.mrb[0].mxu0
    %164 = vdwg.mxu0
    %v165 = vsub.f32 %v61, %v84
    %v166 = vsub.f32 %v62, %v90
    %v167 = vmul.f32 %v165, 1.442695
    %v168 = vpow.pop %v167
    %v169 = vmul.f32 %v166, 1.442695
    %v170 = vpow.pop %v169
    %v171 = vrot.slane %v168, 4
    %v172 = vadd.f32 %v168, %v171
    %v173 = vrot.slane %v172, 2
    %v174 = vadd.f32 %v172, %v173
    %v175 = vrot.slane %v174, 1
    %v176 = vadd.f32 %v174, %v175
    %v177 = vrot.slane %v170, 4
    %v178 = vadd.f32 %v170, %v177
    %v179 = vrot.slane %v178, 2
    %v180 = vadd.f32 %v178, %v179
    %v181 = vrot.slane %v180, 1
    %v182 = vadd.f32 %v180, %v181
    %v183 = vrcp.pop %v176
    %v184 = vrcp.pop %v182
    %v185 = vmul.f32 %v176, %v183
    %v186 = vmul.f32 %v182, %v184
    %v187 = vsub.f32 2.0, %v185
    %v188 = vsub.f32 2.0, %v186
    %v189 = vmul.f32 %v183, %v187
    %v190 = vmul.f32 %v184, %v188
    %v192 = vlaneseq
    %v193 = vshrl.u32 %v192, 7
    %v194 = vsub.s32 0, %v193
    %v195 = vrot.slane %v66, %v194
    %v196 = vlaneseq
    %v197 = vshrl.u32 %v196, 7
    %v198 = vsub.s32 1, %v197
    %v199 = vrot.slane %v66, %v198
    %v202 = vmul.f32 %v61, %v195
    %v203 = vmul.f32 %v62, %v199
    %v204 = vpack.c.bf16 %v202, %v202
    %v205 = vpack.c.bf16 %v203, %v203
    %v208 = vunpack.c.l.b16 %v204
    %v209 = vunpack.c.l.b16 %v205
    %v210 = vpack.c.b16 %v209, %v208
    %212 = vst [vmem:[#allocation8] sm:$0xff] %v210
    %v214 = vlaneseq
    %v215 = vshrl.u32 %v214, 7
    %v216 = vsub.s32 0, %v215
    %v217 = vrot.slane %v65, %v216
    %v218 = vlaneseq
    %v219 = vshrl.u32 %v218, 7
    %v220 = vsub.s32 1, %v219
    %v221 = vrot.slane %v65, %v220
    %v224 = vmul.f32 %v159, %v217
    %v225 = vmul.f32 %v161, %v221
    %v226 = vpack.c.bf16 %v224, %v224
    %v227 = vpack.c.bf16 %v225, %v225
    %v230 = vunpack.c.l.b16 %v226
    %v231 = vunpack.c.l.b16 %v227
    %v232 = vpack.c.b16 %v231, %v230
    %234 = vst [vmem:[#allocation9] sm:$0xff] %v232
    %v237 = vcombine.low %v189, %v190
    %v239 = vunpack.c.l.s4 1966171168
    %v240 = vunpack.c.0.s8 %v239
    %v241 = vlaneseq
    %v242 = vshrl.u32 %v241, 7
    %v243 = vsub.s32 %v240, %v242
    %v244 = vrot.slane %v237, %v243
    %v246 = vunpack.c.l.s4 1966171168
    %v247 = vunpack.c.0.s8 %v246
    %v248 = vlaneseq
    %v249 = vshrl.u32 %v248, 7
    %v250 = vsub.s32 %v247, %v249
    %v251 = vrot.slane %v244, %v250
    %v253 = vlaneseq
    %vm254 = vcmp.ge.s32.totalorder %v253, 0
    %vm255 = vcmp.lt.s32.totalorder %v253, 256
    %vm256 = vmand %vm254, %vm255
    %257 = vst.msk [vmem:[#allocation11] sm:$0x3] %vm256, %v251
    // Predicated region
    $region34: #{tpu_custom_call.1} parent=1 // pred_check
      _
    $region35: #{tpu_custom_call.1} parent=1 // pred_check_branch
      %259 = sbr.rel (0) target = $region37
    $region36: #{tpu_custom_call.1} parent=1 // pred_region
      %s261 = ssub.s32 128, 128
      %262 = vsyncadd [#allocation4], %s261
      %s264 = sshll.u32 [#allocation8], 4
      %s265 = int_to_ptr.vmem [resolvable:$true] %s264
      %267 = dma.vmem_to_hbm [thread:$0]  %s265, 128, %s5, [#allocation4]
    $region37: #{tpu_custom_call.1} parent=1 // pred_fallthru
      _
    // Predicated region
    $region38: #{tpu_custom_call.1} parent=1 // pred_check
      _
    $region39: #{tpu_custom_call.1} parent=1 // pred_check_branch
      %269 = sbr.rel (0) target = $region41
    $region40: #{tpu_custom_call.1} parent=1 // pred_region
      %s271 = ssub.s32 128, 128
      %272 = vsyncadd [#allocation10], %s271
      %s274 = sshll.u32 [#allocation9], 4
      %s275 = int_to_ptr.vmem [resolvable:$true] %s274
      %277 = dma.vmem_to_hbm [thread:$0]  %s275, 128, %s6, [#allocation10]
    $region41: #{tpu_custom_call.1} parent=1 // pred_fallthru
      _
    // Predicated region
    $region42: #{tpu_custom_call.1} parent=1 // pred_check
      _
    $region43: #{tpu_custom_call.1} parent=1 // pred_check_branch
      %279 = sbr.rel (0) target = $region45
    $region44: #{tpu_custom_call.1} parent=1 // pred_region
      %s281 = ssub.s32 32, 32
      %282 = vsyncadd [#allocation10], %s281
      %s284 = sshll.u32 [#allocation11], 4
      %s285 = int_to_ptr.vmem [resolvable:$true] %s284
      %287 = dma.vmem_to_hbm [thread:$0]  %s285, 32, %s7, [#allocation10]
    $region45: #{tpu_custom_call.1} parent=1 // pred_fallthru
      _
    // Predicated region
    $region46: #{tpu_custom_call.1} parent=1 // pred_check
      _
    $region47: #{tpu_custom_call.1} parent=1 // pred_check_branch
      %289 = sbr.rel (0) target = $region49
    $region48: #{tpu_custom_call.1} parent=1 // pred_region
      %290 = dma.done [#allocation4], 128
    $region49: #{tpu_custom_call.1} parent=1 // pred_fallthru
      _
    // Predicated region
    $region50: #{tpu_custom_call.1} parent=1 // pred_check
      _
    $region51: #{tpu_custom_call.1} parent=1 // pred_check_branch
      %292 = sbr.rel (0) target = $region53
    $region52: #{tpu_custom_call.1} parent=1 // pred_region
      %293 = dma.done [#allocation10], 128
    $region53: #{tpu_custom_call.1} parent=1 // pred_fallthru
      _
    // Predicated region
    $region54: #{tpu_custom_call.1} parent=1 // pred_check
      _
    $region55: #{tpu_custom_call.1} parent=1 // pred_check_branch
      %295 = sbr.rel (0) target = $region57
    $region56: #{tpu_custom_call.1} parent=1 // pred_region
      %296 = dma.done [#allocation10], 32
    $region57: #{tpu_custom_call.1} parent=1 // pred_fallthru
      _
    %297 = vsyncpa [#allocation3], 1
    %298 = vsyncpa [#allocation6], 1
    %299 = vsyncpa [#allocation4], 1
    %300 = vsyncpa [#allocation10], 1

</llo_original>
